<compile_context>
chip_gen: v7x
topology: tpu7x:2x2x1
jax: 0.10.0
libtpu: 0.0.40
codegen_flags: <defaults>
</compile_context>

<pallas_src>
import numpy as np
import jax
import jax.numpy as jnp
from jax.experimental import pallas as pl
from jax.experimental.pallas import tpu as pltpu


_ROW0 = 8      # sublane-aligned row offset of the dw-conv interior in scratch
_COL0 = 128    # lane-aligned column offset of the dw-conv interior in scratch


# --------------------------------------------------------------------------
# small helpers
# --------------------------------------------------------------------------
def _zero_map(nd):
    return lambda n, _nd=nd: (0,) * _nd


def _feat_map():
    return lambda n: (n, 0, 0)


_INTERP_CACHE = {}


def _interp_matrix_np(n_out, n_in):
    """Bilinear interpolation matrix, align_corners=True (nn.UpsamplingBilinear2d)."""
    if n_in == 1:
        return np.ones((n_out, 1), np.float32)
    src = np.arange(n_out, dtype=np.float64) * (n_in - 1) / (n_out - 1)
    lo = np.clip(np.floor(src).astype(np.int64), 0, n_in - 2)
    frac = src - lo
    mat = np.zeros((n_out, n_in), np.float32)
    mat[np.arange(n_out), lo] = (1.0 - frac).astype(np.float32)
    mat[np.arange(n_out), lo + 1] = frac.astype(np.float32)
    return mat


def interp_matrix(n_out, n_in):
    key = (n_out, n_in)
    if key not in _INTERP_CACHE:
        _INTERP_CACHE[key] = jnp.asarray(_interp_matrix_np(n_out, n_in))
    return _INTERP_CACHE[key]


def fold_bn(w, conv_b, gamma, beta, mean, var, eps=1e-5):
    """Fold eval-mode BatchNorm into a (Cin,Cout) 1x1-conv weight / bias."""
    scale = gamma / jnp.sqrt(var + eps)
    return w * scale[None, :], (conv_b - mean) * scale + beta


# --------------------------------------------------------------------------
# Fused per-level kernel: branch upsamples + sum + DecoderFusion layers
# --------------------------------------------------------------------------
def make_level_kernel(*, branch_meta, layer_ks, H, W, C, pmax):
    """branch_meta: tuple of ("id",) or ("up", h_s, w_s, c_hi) descriptors.
    layer_ks: static kernel sizes (k) of the fusion layers."""
    n_layers = len(layer_ks)

    def kernel(*refs):
        idx = 0
        y = None
        # ------- gather connected features (identity / conv+BN+ReLU+upsample)
        for bm in branch_meta:
            if bm[0] == "id":
                f = refs[idx][0].astype(jnp.float32)              # (H, W*C)
                idx += 1
            else:
                f_ref, bd_ref, bsc_ref, gw_ref, uh_ref = refs[idx:idx + 5]
                idx += 5
                xs = f_ref[0].astype(jnp.float32)                 # (h_s, w_s*C_hi)
                v = jnp.dot(xs, bd_ref[...], preferred_element_type=jnp.float32)
                v = jnp.maximum(v + bsc_ref[...], 0.0)            # 1x1 conv + BN + ReLU
                v = jnp.dot(v, gw_ref[...], preferred_element_type=jnp.float32)   # W upsample
                f = jnp.dot(uh_ref[...], v, preferred_element_type=jnp.float32)   # H upsample
            y = f if y is None else y + f                         # elementwise-sum fusion

        layer_refs = []
        for _ in range(n_layers):
            layer_refs.append(tuple(refs[idx:idx + 3]))
            idx += 3
        o_ref = refs[idx]
        pad_ref = refs[idx + 1]

        # ------- DecoderFusion: (dw kxk conv -> 1x1 conv + BN + ReLU) per layer
        pad_ref[...] = jnp.zeros_like(pad_ref)                    # zero halo once
        for k, (dw_ref, pw_ref, b_ref) in zip(layer_ks, layer_refs):
            p = k // 2
            # aligned interior store; surrounding halo stays zero ('same' padding)
            pad_ref[_ROW0:_ROW0 + H, _COL0:_COL0 + W * C] = y
            xpad = pad_ref[...]
            dw = dw_ref[...]                                      # (k*k, W*C) pre-tiled taps
            acc = jnp.zeros((H, W * C), jnp.float32)
            for i in range(k):                                    # static unrolled kxk taps
                for j in range(k):
                    r0 = _ROW0 - p + i
                    c0 = _COL0 + (j - p) * C
                    win = xpad[r0:r0 + H, c0:c0 + W * C]
                    acc = acc + win * dw[i * k + j:i * k + j + 1, :]
            # pointwise conv (block-diagonal kron weight keeps lane-dense layout)
            y = jnp.dot(acc, pw_ref[...], preferred_element_type=jnp.float32)
            y = jnp.maximum(y + b_ref[...], 0.0)
        o_ref[0] = y.astype(o_ref.dtype)

    return kernel


def fused_level_call(branch_inputs, fusion_params, N, H, W, C):
    """branch_inputs: list of ("id", arr, h, w, c) or
    ("up", arr, h, w, c, conv_bd, bias_t, gw, uh).
    fusion_params: list of (k, dw_tiled, pw_blockdiag, bias_tiled)."""
    layer_ks = tuple(k for (k, _, _, _) in fusion_params)
    pmax = max([k // 2 for k in layer_ks], default=0)

    inputs, in_specs, branch_meta = [], [], []
    for b in branch_inputs:
        if b[0] == "id":
            _, arr, h_s, w_s, c_s = b
            branch_meta.append(("id",))
            inputs.append(arr)
            in_specs.append(pl.BlockSpec((1, h_s, w_s * c_s), _feat_map()))
        else:
            _, arr, h_s, w_s, c_s, conv_bd, bias_t, gw, uh = b
            branch_meta.append(("up", h_s, w_s, c_s))
            inputs.append(arr)
            in_specs.append(pl.BlockSpec((1, h_s, w_s * c_s), _feat_map()))
            for wm in (conv_bd, bias_t, gw, uh):
                inputs.append(wm)
                in_specs.append(pl.BlockSpec(wm.shape, _zero_map(wm.ndim)))
    for (k, dw_t, pw_bd, bias_t) in fusion_params:
        for wm in (dw_t, pw_bd, bias_t):
            inputs.append(wm)
            in_specs.append(pl.BlockSpec(wm.shape, _zero_map(wm.ndim)))

    kernel = make_level_kernel(branch_meta=tuple(branch_meta), layer_ks=layer_ks,
                               H=H, W=W, C=C, pmax=pmax)
    scratch = pltpu.VMEM((_ROW0 + H + pmax, _COL0 + (W + pmax) * C), jnp.float32)
    return pl.pallas_call(
        kernel,
        out_shape=jax.ShapeDtypeStruct((N, H, W * C), jnp.float32),
        grid=(N,),
        in_specs=in_specs,
        out_specs=pl.BlockSpec((1, H, W * C), _feat_map()),
        scratch_shapes=[scratch],
        compiler_params=pltpu.CompilerParams(dimension_semantics=("parallel",)),
    )(*inputs)


# --------------------------------------------------------------------------
# Fused output-head kernel: 1x1 conv -> activation -> bilinear upsample
# --------------------------------------------------------------------------
def make_head_kernel(*, act):
    def kernel(*refs):
        if act == "softmax":
            x_ref, bd_ref, b_ref, ones_ref, gw_ref, uh_ref, o_ref = refs
        else:
            x_ref, bd_ref, b_ref, gw_ref, uh_ref, o_ref = refs
        x = x_ref[0].astype(jnp.float32)                          # (H, W*C)
        y = jnp.dot(x, bd_ref[...], preferred_element_type=jnp.float32) + b_ref[...]
        if act == "sigmoid":
            y = jax.nn.sigmoid(y)
        elif act == "softmax":
            # TODO(synk): softmax head omits max-subtraction (unused in the example path)
            e = jnp.exp(y)
            y = e / jnp.dot(e, ones_ref[...], preferred_element_type=jnp.float32)
        y = jnp.dot(y, gw_ref[...], preferred_element_type=jnp.float32)   # W upsample
        y = jnp.dot(uh_ref[...], y, preferred_element_type=jnp.float32)   # H upsample
        o_ref[0] = y.astype(o_ref.dtype)

    return kernel


# --------------------------------------------------------------------------
# Decoder sub-modules (deterministic synthetic parameters)
# --------------------------------------------------------------------------
class IdentityJax:
    pass


class DecoderUpsampleJax:
    """1x1 Conv(no bias) + BN + ReLU, then bilinear upsample by 2**up_scale."""

    def __init__(self, key, up_scale, in_channels, out_channels):
        self.up = 2 ** up_scale
        k1, k2, k3, k4 = jax.random.split(key, 4)
        w = jax.random.normal(k1, (in_channels, out_channels), jnp.float32) / np.sqrt(in_channels)
        gamma = 1.0 + 0.1 * jax.random.normal(k2, (out_channels,), jnp.float32)
        beta = 0.1 * jax.random.normal(k3, (out_channels,), jnp.float32)
        mean = 0.1 * jax.random.normal(k4, (out_channels,), jnp.float32)
        var = jnp.ones((out_channels,), jnp.float32)
        self.w, self.b = fold_bn(w, jnp.zeros((out_channels,), jnp.float32),
                                 gamma, beta, mean, var)
        self._cache = {}

    def params_for(self, h_s, w_s):
        """Hoisted / cached structured matrices for the fused level kernel."""
        key = (h_s, w_s)
        if key not in self._cache:
            cout = self.w.shape[1]
            conv_bd = jnp.kron(jnp.eye(w_s, dtype=jnp.float32), self.w)   # (w_s*Cin, w_s*Cout)
            bias_t = jnp.tile(self.b, w_s)[None, :]                       # (1, w_s*Cout)
            uw = interp_matrix(w_s * self.up, w_s)
            gw = jnp.kron(uw.T, jnp.eye(cout, dtype=jnp.float32))         # (w_s*Cout, W*Cout)
            uh = interp_matrix(h_s * self.up, h_s)                        # (H, h_s)
            self._cache[key] = (conv_bd, bias_t, gw, uh)
        return self._cache[key]


class DecoderFusionJax:
    """Elementwise-sum fusion + (dw kxk conv + pw 1x1 conv + BN + ReLU) per kernel size."""

    def __init__(self, key, channels, kernel_size_array):
        self.layers = []
        for idx, k in enumerate(kernel_size_array):
            keys = jax.random.split(jax.random.fold_in(key, idx), 6)
            dw = jax.random.normal(keys[0], (k, k, channels), jnp.float32) / float(k)
            pw = jax.random.normal(keys[1], (channels, channels), jnp.float32) / np.sqrt(channels)
            gamma = 1.0 + 0.1 * jax.random.normal(keys[2], (channels,), jnp.float32)
            beta = 0.1 * jax.random.normal(keys[3], (channels,), jnp.float32)
            mean = 0.1 * jax.random.normal(keys[4], (channels,), jnp.float32)
            var = jnp.ones((channels,), jnp.float32)
            pw_f, b_f = fold_bn(pw, jnp.zeros((channels,), jnp.float32),
                                gamma, beta, mean, var)
            self.layers.append((k, dw, pw_f, b_f))
        self._cache = {}

    def params_for(self, W):
        if W not in self._cache:
            params = []
            for (k, dw, pw_f, b_f) in self.layers:
                C = dw.shape[-1]
                dw_t = jnp.tile(dw, (1, 1, W)).reshape(k * k, W * C)       # per-tap lane vectors
                pw_bd = jnp.kron(jnp.eye(W, dtype=jnp.float32), pw_f)      # (W*C, W*C) block-diag
                bias_t = jnp.tile(b_f, W)[None, :]                         # (1, W*C)
                params.append((k, dw_t, pw_bd, bias_t))
            self._cache[W] = params
        return self._cache[W]


class OutputHeadJax:
    """Conv2d(C, num_classes, 1) + activation + UpsamplingBilinear2d(2**(level+1))."""

    def __init__(self, key, channels, num_classes, activation, level_idx):
        k1, k2 = jax.random.split(key)
        self.w = jax.random.normal(k1, (channels, num_classes), jnp.float32) / np.sqrt(channels)
        self.b = 0.1 * jax.random.normal(k2, (num_classes,), jnp.float32)
        self.activation = activation
        self.up = 2 ** (level_idx + 1)
        self._cache = {}

    def params_for(self, H, W):
        key = (H, W)
        if key not in self._cache:
            nc = self.w.shape[1]
            bd = jnp.kron(jnp.eye(W, dtype=jnp.float32), self.w)          # (W*C, W*nc)
            bias_t = jnp.tile(self.b, W)[None, :]                         # (1, W*nc)
            uw = interp_matrix(W * self.up, W)
            gw = jnp.kron(uw.T, jnp.eye(nc, dtype=jnp.float32))           # (W*nc, Wo*nc)
            uh = interp_matrix(H * self.up, H)                            # (Ho, H)
            ones_k = jnp.kron(jnp.eye(W, dtype=jnp.float32),
                              jnp.ones((nc, nc), jnp.float32))            # group-sum for softmax
            self._cache[key] = (bd, bias_t, gw, uh, ones_k)
        return self._cache[key]

    def __call__(self, arr, H, W, C, N):
        nc = self.w.shape[1]
        Ho, Wo = H * self.up, W * self.up
        bd, bias_t, gw, uh, ones_k = self.params_for(H, W)
        act = self.activation
        inputs = [arr, bd, bias_t]
        if act == "softmax":
            inputs.append(ones_k)
        inputs += [gw, uh]
        in_specs = [pl.BlockSpec((1, H, W * C), _feat_map())]
        in_specs += [pl.BlockSpec(wm.shape, _zero_map(wm.ndim)) for wm in inputs[1:]]
        out = pl.pallas_call(
            make_head_kernel(act=act),
            out_shape=jax.ShapeDtypeStruct((N, Ho, Wo * nc), jnp.float32),
            grid=(N,),
            in_specs=in_specs,
            out_specs=pl.BlockSpec((1, Ho, Wo * nc), _feat_map()),
            compiler_params=pltpu.CompilerParams(dimension_semantics=("parallel",)),
        )(*inputs)
        return (out, Ho, Wo, nc)


class DecoderJax:
    def __init__(self, key, cfg, level_channel_dict, num_classes, activation, output_level_ids):
        assert activation in ["sigmoid", "none", "softmax"]
        self.cfg = cfg
        self.level_channel_dict = level_channel_dict
        self.output_level_ids = eval(output_level_ids)
        self.mainops, self.branches, self.decoder_dict = {}, {}, {}
        for li, (level_name, level_cfg) in enumerate(cfg.items()):
            lkey = jax.random.fold_in(key, li)
            channels = level_channel_dict[level_name]
            self.mainops[level_name] = DecoderFusionJax(
                jax.random.fold_in(lkey, 0), channels, level_cfg["kernel"])
            level_idx = int(level_name.split("_")[1])
            self.branches[level_name] = {}
            for ci, connect_idx in enumerate(level_cfg["connection"]):
                if level_idx == connect_idx:
                    self.branches[level_name][str(connect_idx)] = IdentityJax()
                elif level_idx < connect_idx:
                    self.branches[level_name][str(connect_idx)] = DecoderUpsampleJax(
                        jax.random.fold_in(lkey, 100 + ci),
                        connect_idx - level_idx,
                        in_channels=level_channel_dict["level_%d" % connect_idx],
                        out_channels=level_channel_dict["level_%d" % level_idx])
        for li, (level_name, channels) in enumerate(level_channel_dict.items()):
            level_idx = int(level_name.split("_")[1])
            if level_idx in self.output_level_ids:
                self.decoder_dict[level_name] = OutputHeadJax(
                    jax.random.fold_in(key, 1000 + li), channels,
                    num_classes, activation, level_idx)

    def __call__(self, feats, training=False):
        # feats: dict level_name -> (arr (N, H, W*C), H, W, C)
        state = dict(feats)
        N = next(iter(feats.values()))[0].shape[0]
        for level_name in ["level_4", "level_3", "level_2", "level_1", "level_0"]:
            level_idx = int(level_name.split("_")[1])
            _, H, W, C = state[level_name]
            branch_inputs = []
            for connect_idx in self.cfg[level_name]["connection"]:
                arr_s, h_s, w_s, c_s = state["level_%d" % connect_idx]
                branch = self.branches[level_name][str(connect_idx)]
                if isinstance(branch, IdentityJax):
                    branch_inputs.append(("id", arr_s, h_s, w_s, c_s))
                else:
                    branch_inputs.append(("up", arr_s, h_s, w_s, c_s)
                                         + branch.params_for(h_s, w_s))
            fparams = self.mainops[level_name].params_for(W)
            out_arr = fused_level_call(branch_inputs, fparams, N, H, W, C)
            state[level_name] = (out_arr, H, W, C)
        if training:
            out = dict(state)
            for level_name, head in self.decoder_dict.items():
                arr, H, W, C = state[level_name]
                out[level_name] = head(arr, H, W, C, N)
            return out
        arr, H, W, C = state["level_0"]
        return self.decoder_dict["level_0"](arr, H, W, C, N)


def decoder_forward_nchw(decoder, x_nchw, training=False):
    # layout: external NCHW (PyTorch convention) <-> internal lane-dense (N, H, W*C)
    feats = {}
    for name, v in x_nchw.items():
        Nb, C, H, W = v.shape
        nhwc = jnp.transpose(v, (0, 2, 3, 1))
        feats[name] = (nhwc.reshape(Nb, H, W * C), H, W, C)

    def to_nchw(t):
        arr, H, W, C = t
        return jnp.transpose(arr.reshape(arr.shape[0], H, W, C), (0, 3, 1, 2))

    out = decoder(feats, training=training)
    if training:
        return {k: to_nchw(v) for k, v in out.items()}
    return to_nchw(out)


# --------------------------------------------------------------------------
if __name__ == "__main__":
    key = jax.random.PRNGKey(0)

    level_channel_dict = {"level_0": 8, "level_1": 8, "level_2": 16,
                          "level_3": 16, "level_4": 16}
    cfg = {
        "level_4": {"kernel": [3], "connection": [4]},
        "level_3": {"kernel": [3], "connection": [3, 4]},
        "level_2": {"kernel": [3, 5], "connection": [2, 3]},
        "level_1": {"kernel": [3], "connection": [1, 2]},
        "level_0": {"kernel": [3], "connection": [0, 1]},
    }
    num_classes = 1

    decoder = DecoderJax(jax.random.fold_in(key, 42), cfg, level_channel_dict,
                         num_classes, "sigmoid", "[0]")

    # feature pyramid: level_i has spatial 32 / 2**i (input image would be 64x64)
    N, base = 2, 32
    x = {}
    for i in range(5):
        c = level_channel_dict["level_%d" % i]
        h = base // (2 ** i)
        x["level_%d" % i] = jax.random.normal(
            jax.random.fold_in(key, i), (N, c, h, h), jnp.float32)

    out = decoder_forward_nchw(decoder, x, training=False)   # eval path
    out = jax.block_until_ready(out)
    assert out.shape == (N, num_classes, base * 2, base * 2), out.shape
    assert bool(jnp.all(jnp.isfinite(out)))
    print("KERNEL_OK")
</pallas_src>

<mosaic_0001>
module attributes {stable_mosaic.version = 11 : i64} {
  func.func @kernel(%arg0: i32, %arg1: memref<1x2x32xf32, #tpu.memory_space<vmem>>, %arg2: memref<9x32xf32, #tpu.memory_space<vmem>>, %arg3: memref<32x32xf32, #tpu.memory_space<vmem>>, %arg4: memref<1x32xf32, #tpu.memory_space<vmem>>, %arg5: memref<1x2x32xf32, #tpu.memory_space<vmem>>, %arg6: memref<11x176xf32, #tpu.memory_space<vmem>>) attributes {dimension_semantics = [#tpu.dimension_semantics<parallel>], iteration_bounds = array<i64: 2>, scalar_prefetch = 0 : i64, scratch_operands = 1 : i64, tpu.core_type = #tpu.core_type<tc>, window_params = [{transform_indices = @transform_0, window_bounds = array<i64: 1, 2, 32>}, {pipeline_mode = #tpu.pipeline_mode<synchronous>, transform_indices = @transform_1, window_bounds = array<i64: 9, 32>}, {pipeline_mode = #tpu.pipeline_mode<synchronous>, transform_indices = @transform_2, window_bounds = array<i64: 32, 32>}, {pipeline_mode = #tpu.pipeline_mode<synchronous>, transform_indices = @transform_3, window_bounds = array<i64: 1, 32>}, {transform_indices = @transform_4, window_bounds = array<i64: 1, 2, 32>}]} {
    %c0 = arith.constant 0 : index
    %c0_0 = arith.constant 0 : index
    %c0_1 = arith.constant 0 : index
    %0 = vector.load %arg1[%c0, %c0_0, %c0_1] : memref<1x2x32xf32, #tpu.memory_space<vmem>>, vector<1x2x32xf32>
    %1 = vector.shape_cast %0 : vector<1x2x32xf32> to vector<2x32xf32>
    %cst = arith.constant 0.000000e+00 : f32
    %2 = vector.broadcast %cst : f32 to vector<11x176xf32>
    %c0_2 = arith.constant 0 : index
    %c0_3 = arith.constant 0 : index
    %3 = vector.load %arg6[%c0_2, %c0_3] : memref<11x176xf32, #tpu.memory_space<vmem>>, vector<11x176xf32>
    tpu.vector_store %arg6[%c0_2, %c0_3], %2 {strides = array<i32>} : memref<11x176xf32, #tpu.memory_space<vmem>>, vector<11x176xf32>,
    %c8 = arith.constant 8 : index
    %c128 = arith.constant 128 : index
    %4 = vector.load %arg6[%c8, %c128] : memref<11x176xf32, #tpu.memory_space<vmem>>, vector<2x32xf32>
    tpu.vector_store %arg6[%c8, %c128], %1 {strides = array<i32>} : memref<11x176xf32, #tpu.memory_space<vmem>>, vector<2x32xf32>,
    %c0_4 = arith.constant 0 : index
    %c0_5 = arith.constant 0 : index
    %5 = vector.load %arg6[%c0_4, %c0_5] : memref<11x176xf32, #tpu.memory_space<vmem>>, vector<11x176xf32>
    %c0_6 = arith.constant 0 : index
    %c0_7 = arith.constant 0 : index
    %6 = vector.load %arg2[%c0_6, %c0_7] : memref<9x32xf32, #tpu.memory_space<vmem>>, vector<9x32xf32>
    %cst_8 = arith.constant 0.000000e+00 : f32
    %7 = vector.broadcast %cst_8 : f32 to vector<2x32xf32>
    %8 = vector.extract_strided_slice %5 {offsets = [7, 112], sizes = [2, 32], strides = [1, 1]} : vector<11x176xf32> to vector<2x32xf32>
    %9 = vector.extract_strided_slice %6 {offsets = [0, 0], sizes = [1, 32], strides = [1, 1]} : vector<9x32xf32> to vector<1x32xf32>
    %10 = vector.broadcast %9 : vector<1x32xf32> to vector<2x32xf32>
    %11 = arith.mulf %8, %10 : vector<2x32xf32>
    %12 = arith.addf %7, %11 : vector<2x32xf32>
    %13 = vector.extract_strided_slice %5 {offsets = [7, 128], sizes = [2, 32], strides = [1, 1]} : vector<11x176xf32> to vector<2x32xf32>
    %14 = vector.extract_strided_slice %6 {offsets = [1, 0], sizes = [1, 32], strides = [1, 1]} : vector<9x32xf32> to vector<1x32xf32>
    %15 = vector.broadcast %14 : vector<1x32xf32> to vector<2x32xf32>
    %16 = arith.mulf %13, %15 : vector<2x32xf32>
    %17 = arith.addf %12, %16 : vector<2x32xf32>
    %18 = vector.extract_strided_slice %5 {offsets = [7, 144], sizes = [2, 32], strides = [1, 1]} : vector<11x176xf32> to vector<2x32xf32>
    %19 = vector.extract_strided_slice %6 {offsets = [2, 0], sizes = [1, 32], strides = [1, 1]} : vector<9x32xf32> to vector<1x32xf32>
    %20 = vector.broadcast %19 : vector<1x32xf32> to vector<2x32xf32>
    %21 = arith.mulf %18, %20 : vector<2x32xf32>
    %22 = arith.addf %17, %21 : vector<2x32xf32>
    %23 = vector.extract_strided_slice %5 {offsets = [8, 112], sizes = [2, 32], strides = [1, 1]} : vector<11x176xf32> to vector<2x32xf32>
    %24 = vector.extract_strided_slice %6 {offsets = [3, 0], sizes = [1, 32], strides = [1, 1]} : vector<9x32xf32> to vector<1x32xf32>
    %25 = vector.broadcast %24 : vector<1x32xf32> to vector<2x32xf32>
    %26 = arith.mulf %23, %25 : vector<2x32xf32>
    %27 = arith.addf %22, %26 : vector<2x32xf32>
    %28 = vector.extract_strided_slice %5 {offsets = [8, 128], sizes = [2, 32], strides = [1, 1]} : vector<11x176xf32> to vector<2x32xf32>
    %29 = vector.extract_strided_slice %6 {offsets = [4, 0], sizes = [1, 32], strides = [1, 1]} : vector<9x32xf32> to vector<1x32xf32>
    %30 = vector.broadcast %29 : vector<1x32xf32> to vector<2x32xf32>
    %31 = arith.mulf %28, %30 : vector<2x32xf32>
    %32 = arith.addf %27, %31 : vector<2x32xf32>
    %33 = vector.extract_strided_slice %5 {offsets = [8, 144], sizes = [2, 32], strides = [1, 1]} : vector<11x176xf32> to vector<2x32xf32>
    %34 = vector.extract_strided_slice %6 {offsets = [5, 0], sizes = [1, 32], strides = [1, 1]} : vector<9x32xf32> to vector<1x32xf32>
    %35 = vector.broadcast %34 : vector<1x32xf32> to vector<2x32xf32>
    %36 = arith.mulf %33, %35 : vector<2x32xf32>
    %37 = arith.addf %32, %36 : vector<2x32xf32>
    %38 = vector.extract_strided_slice %5 {offsets = [9, 112], sizes = [2, 32], strides = [1, 1]} : vector<11x176xf32> to vector<2x32xf32>
    %39 = vector.extract_strided_slice %6 {offsets = [6, 0], sizes = [1, 32], strides = [1, 1]} : vector<9x32xf32> to vector<1x32xf32>
    %40 = vector.broadcast %39 : vector<1x32xf32> to vector<2x32xf32>
    %41 = arith.mulf %38, %40 : vector<2x32xf32>
    %42 = arith.addf %37, %41 : vector<2x32xf32>
    %43 = vector.extract_strided_slice %5 {offsets = [9, 128], sizes = [2, 32], strides = [1, 1]} : vector<11x176xf32> to vector<2x32xf32>
    %44 = vector.extract_strided_slice %6 {offsets = [7, 0], sizes = [1, 32], strides = [1, 1]} : vector<9x32xf32> to vector<1x32xf32>
    %45 = vector.broadcast %44 : vector<1x32xf32> to vector<2x32xf32>
    %46 = arith.mulf %43, %45 : vector<2x32xf32>
    %47 = arith.addf %42, %46 : vector<2x32xf32>
    %48 = vector.extract_strided_slice %5 {offsets = [9, 144], sizes = [2, 32], strides = [1, 1]} : vector<11x176xf32> to vector<2x32xf32>
    %49 = vector.extract_strided_slice %6 {offsets = [8, 0], sizes = [1, 32], strides = [1, 1]} : vector<9x32xf32> to vector<1x32xf32>
    %50 = vector.broadcast %49 : vector<1x32xf32> to vector<2x32xf32>
    %51 = arith.mulf %48, %50 : vector<2x32xf32>
    %52 = arith.addf %47, %51 : vector<2x32xf32>
    %c0_9 = arith.constant 0 : index
    %c0_10 = arith.constant 0 : index
    %53 = vector.load %arg3[%c0_9, %c0_10] : memref<32x32xf32, #tpu.memory_space<vmem>>, vector<32x32xf32>
    %cst_11 = arith.constant dense<0.000000e+00> : vector<2x32xf32>
    %54 = tpu.matmul %52, %53, %cst_11 {dimension_numbers = #tpu.dot_dimension_numbers<[1], [0], [0], [1], [0, 0, 1, 1], [], []>} : vector<2x32xf32>, vector<32x32xf32>, vector<2x32xf32> -> vector<2x32xf32>
    %c0_12 = arith.constant 0 : index
    %c0_13 = arith.constant 0 : index
    %55 = vector.load %arg4[%c0_12, %c0_13] : memref<1x32xf32, #tpu.memory_space<vmem>>, vector<1x32xf32>
    %56 = vector.broadcast %55 : vector<1x32xf32> to vector<2x32xf32>
    %57 = arith.addf %54, %56 : vector<2x32xf32>
    %cst_14 = arith.constant 0.000000e+00 : f32
    %58 = vector.broadcast %cst_14 : f32 to vector<2x32xf32>
    %59 = arith.maximumf %57, %58 : vector<2x32xf32>
    %c0_15 = arith.constant 0 : index
    %c0_16 = arith.constant 0 : index
    %c0_17 = arith.constant 0 : index
    %60 = vector.load %arg5[%c0_15, %c0_16, %c0_17] : memref<1x2x32xf32, #tpu.memory_space<vmem>>, vector<1x2x32xf32>
    %61 = vector.shape_cast %60 : vector<1x2x32xf32> to vector<2x32xf32>
    %62 = vector.shape_cast %59 : vector<2x32xf32> to vector<1x2x32xf32>
    tpu.vector_store %arg5[%c0_15, %c0_16, %c0_17], %62 {strides = array<i32>} : memref<1x2x32xf32, #tpu.memory_space<vmem>>, vector<1x2x32xf32>,
    return
  }
  func.func @transform_0(%arg0: i32) -> (i32, i32, i32) {
    %c0_i32 = arith.constant 0 : i32
    %c0_i32_0 = arith.constant 0 : i32
    %c0_i32_1 = arith.constant 0 : i32
    return %arg0, %c0_i32, %c0_i32_0 : i32, i32, i32
  }
  func.func @transform_1(%arg0: i32) -> (i32, i32) {
    %c0_i32 = arith.constant 0 : i32
    %c0_i32_0 = arith.constant 0 : i32
    %c0_i32_1 = arith.constant 0 : i32
    return %c0_i32, %c0_i32_0 : i32, i32
  }
  func.func @transform_2(%arg0: i32) -> (i32, i32) {
    %c0_i32 = arith.constant 0 : i32
    %c0_i32_0 = arith.constant 0 : i32
    %c0_i32_1 = arith.constant 0 : i32
    return %c0_i32, %c0_i32_0 : i32, i32
  }
  func.func @transform_3(%arg0: i32) -> (i32, i32) {
    %c0_i32 = arith.constant 0 : i32
    %c0_i32_0 = arith.constant 0 : i32
    %c0_i32_1 = arith.constant 0 : i32
    return %c0_i32, %c0_i32_0 : i32, i32
  }
  func.func @transform_4(%arg0: i32) -> (i32, i32, i32) {
    %c0_i32 = arith.constant 0 : i32
    %c0_i32_0 = arith.constant 0 : i32
    %c0_i32_1 = arith.constant 0 : i32
    return %arg0, %c0_i32, %c0_i32_0 : i32, i32, i32
  }
}

</mosaic_0001>

<llo_original>
// kernel: tpu_custom_call.1
$region0: #{tpu_custom_call.1}
  #allocation0 [shape = 'u32[]', space=smem, size = 0x4, offset = 0x4, fixed_abs, tag = 'smem constant byte address 0x4 - core index']
  #allocation1 [shape = 'u32[144,128]{1,0:T(1,128)}', space=vmem, size = 0x12000, scoped, tag = 'internal scratch']
  #allocation2 [shape = 'f32[11,176]{1,0:T(8,128)}', space=vmem, size = 0x4000, scoped, tag = 'scratch operand']
  %s0 = inlined_call_operand.hbm [shape: f32[2,2,32], index: 0, kind: input, shape index: {}]
  %s1 = inlined_call_operand.hbm [shape: f32[9,32], index: 1, kind: input, shape index: {}]
  %s2 = inlined_call_operand.hbm [shape: f32[32,32], index: 2, kind: input, shape index: {}]
  %s3 = inlined_call_operand.vmem [shape: f32[1,32], index: 3, kind: input, shape index: {}]
  %s4 = inlined_call_operand.hbm [shape: f32[2,2,32], index: 4, kind: output, shape index: {}]
  %s5 = sld [smem:[#allocation0]]
  $region61: #{tpu_custom_call.1} parent=0
    _
  %s7 = ssub.s32 1, %s5
  %s8 = scalar_select 0, %s7, %s5
  $region1: #{tpu_custom_call.1} parent=0
    #allocation3 [shape = 'u8[2048]{0}', space=vmem, size = 0x800, scoped, tag = 'input window, operand 0']
    #allocation4 [shape = 's32[2]{0}', space=sflag, size = 0x8, scoped, tag = 'scoped memory for tpu_custom_call.1']
    #allocation5 [shape = 's32[2]{0}', space=sflag, size = 0x8, scoped, tag = 'scoped memory for tpu_custom_call.1']
    #allocation6 [shape = 'u8[8192]{0}', space=vmem, size = 0x2000, scoped, tag = 'input window, operand 1, single buffered']
    #allocation7 [shape = 's32[1]{0}', space=sflag, size = 0x4, scoped, tag = 'scoped memory for tpu_custom_call.1']
    #allocation8 [shape = 'u8[16384]{0}', space=vmem, size = 0x4000, scoped, tag = 'input window, operand 2, single buffered']
    #allocation9 [shape = 'u8[2048]{0}', space=vmem, size = 0x800, scoped, tag = 'output window, operand 0']
    %9 = vsyncpa [#allocation4], 0
    %s10 = scalar_lea.sflag [#allocation4], 1
    %11 = vsyncpa %s10, 0
    %12 = vsyncpa [#allocation7], 0
    %13 = vsyncpa [#allocation5], 0
    %s14 = scalar_lea.sflag [#allocation5], 1
    %15 = vsyncpa %s14, 0
    loop: start=0, step=1, limit=4
    $region2: #{tpu_custom_call.1} parent=1 // loop_pre_header
      _
    $region3: #{tpu_custom_call.1} parent=1 // loop_header
      %s17 = sphi 0, %s21
      %p18 = scmp.ge.s32.totalorder %s17, 4
      %s27 = sphi 0, %s29
      %s30 = sphi 0, %s27
      %s31 = sphi 0, %s30
      %s47 = sphi 0, %s31
      %s51 = sphi 0, %s51
      %s53 = sphi 0, %s51
      %s54 = sphi 0, %s53
      %s68 = sphi 0, %s54
      %s72 = sphi 0, %s72
      %s74 = sphi 0, %s72
      %s75 = sphi 0, %s74
      %s89 = sphi 0, %s75
      %s93 = sphi 0, %s93
      %s95 = sphi 0, %s93
      %s96 = sphi 0, %s95
      %s110 = sphi 0, %s96
      %s116 = sphi 0, %s118
      %s119 = sphi 0, %s116
      %s120 = sphi 0, %s119
      %s136 = sphi 0, %s120
    $region4: #{tpu_custom_call.1} parent=1 // loop_header_branch
      %20 = sbr.rel (%p18) target = $region8
    $region5: #{tpu_custom_call.1} parent=1 // loop_body
      %s22 = ssub.s32 %s17, 1
      %s23 = ssub.s32 %s17, 2
      %s24 = sadd.s32 %s17, 1
      %s25 = ssub.s32 %s17, %s24
      %p26 = scmp.eq.s32.totalorder %s25, 0
      %s28 = sadd.s32 %s27, 1
      %s29 = scalar_select %p26, %s27, %s28
      %p32 = pneg %p26
      %p33 = scmp.eq.s32.totalorder %s17, 1
      %p34 = por %p32, %p33
      %p35 = scmp.ne.s32.totalorder %s27, %s30
      %p36 = scmp.eq.s32.totalorder %s17, 0
      %p37 = por %p35, %p36
      %p38 = scmp.ne.s32.totalorder %s27, %s30
      %p39 = scmp.eq.s32.totalorder %s22, 1
      %p40 = por %p38, %p39
      %p41 = scmp.ne.s32.totalorder %s30, %s31
      %p42 = scmp.eq.s32.totalorder %s22, 0
      %p43 = por %p41, %p42
      %p44 = scmp.ne.s32.totalorder %s30, %s31
      %p45 = scmp.eq.s32.totalorder %s23, 1
      %p46 = por %p44, %p45
      %p48 = scmp.ne.s32.totalorder %s31, %s47
      %p49 = scmp.eq.s32.totalorder %s23, 0
      %p50 = por %p48, %p49
      %s52 = sadd.s32 %s51, 1
      %p55 = scmp.eq.s32.totalorder %s17, 1
      %p56 = scmp.ne.s32.totalorder %s51, %s53
      %p57 = scmp.eq.s32.totalorder %s17, 0
      %p58 = por %p56, %p57
      %p59 = scmp.ne.s32.totalorder %s51, %s53
      %p60 = scmp.eq.s32.totalorder %s22, 1
      %p61 = por %p59, %p60
      %p62 = scmp.ne.s32.totalorder %s53, %s54
      %p63 = scmp.eq.s32.totalorder %s22, 0
      %p64 = por %p62, %p63
      %p65 = scmp.ne.s32.totalorder %s53, %s54
      %p66 = scmp.eq.s32.totalorder %s23, 1
      %p67 = por %p65, %p66
      %p69 = scmp.ne.s32.totalorder %s54, %s68
      %p70 = scmp.eq.s32.totalorder %s23, 0
      %p71 = por %p69, %p70
      %s73 = sadd.s32 %s72, 1
      %p76 = scmp.eq.s32.totalorder %s17, 1
      %p77 = scmp.ne.s32.totalorder %s72, %s74
      %p78 = scmp.eq.s32.totalorder %s17, 0
      %p79 = por %p77, %p78
      %p80 = scmp.ne.s32.totalorder %s72, %s74
      %p81 = scmp.eq.s32.totalorder %s22, 1
      %p82 = por %p80, %p81
      %p83 = scmp.ne.s32.totalorder %s74, %s75
      %p84 = scmp.eq.s32.totalorder %s22, 0
      %p85 = por %p83, %p84
      %p86 = scmp.ne.s32.totalorder %s74, %s75
      %p87 = scmp.eq.s32.totalorder %s23, 1
      %p88 = por %p86, %p87
      %p90 = scmp.ne.s32.totalorder %s75, %s89
      %p91 = scmp.eq.s32.totalorder %s23, 0
      %p92 = por %p90, %p91
      %s94 = sadd.s32 %s93, 1
      %p97 = scmp.eq.s32.totalorder %s17, 1
      %p98 = scmp.ne.s32.totalorder %s93, %s95
      %p99 = scmp.eq.s32.totalorder %s17, 0
      %p100 = por %p98, %p99
      %p101 = scmp.ne.s32.totalorder %s93, %s95
      %p102 = scmp.eq.s32.totalorder %s22, 1
      %p103 = por %p101, %p102
      %p104 = scmp.ne.s32.totalorder %s95, %s96
      %p105 = scmp.eq.s32.totalorder %s22, 0
      %p106 = por %p104, %p105
      %p107 = scmp.ne.s32.totalorder %s95, %s96
      %p108 = scmp.eq.s32.totalorder %s23, 1
      %p109 = por %p107, %p108
      %p111 = scmp.ne.s32.totalorder %s96, %s110
      %p112 = scmp.eq.s32.totalorder %s23, 0
      %p113 = por %p111, %p112
      %s114 = ssub.s32 %s17, %s24
      %p115 = scmp.eq.s32.totalorder %s114, 0
      %s117 = sadd.s32 %s116, 1
      %s118 = scalar_select %p115, %s116, %s117
      %p121 = pneg %p115
      %p122 = scmp.eq.s32.totalorder %s17, 1
      %p123 = por %p121, %p122
      %p124 = scmp.ne.s32.totalorder %s116, %s119
      %p125 = scmp.eq.s32.totalorder %s17, 0
      %p126 = por %p124, %p125
      %p127 = scmp.ne.s32.totalorder %s116, %s119
      %p128 = scmp.eq.s32.totalorder %s22, 1
      %p129 = por %p127, %p128
      %p130 = scmp.ne.s32.totalorder %s119, %s120
      %p131 = scmp.eq.s32.totalorder %s22, 0
      %p132 = por %p130, %p131
      %p133 = scmp.ne.s32.totalorder %s119, %s120
      %p134 = scmp.eq.s32.totalorder %s23, 1
      %p135 = por %p133, %p134
      %p137 = scmp.ne.s32.totalorder %s120, %s136
      %p138 = scmp.eq.s32.totalorder %s23, 0
      %p139 = por %p137, %p138
      %p140 = scmp.le.s32.totalorder 1, %s17
      %p141 = scmp.lt.s32.totalorder %s17, 3
      %p142 = pnand %p140, %p141
      %p143 = pneg %p142
      // Predicated region
      $region9: #{tpu_custom_call.1} parent=5 // pred_check
        _
      $region10: #{tpu_custom_call.1} parent=5 // pred_check_branch
        %145 = sbr.rel (%p142) target = $region12
      $region11: #{tpu_custom_call.1} parent=5 // pred_region
        %s146 = ssub.s32 %s17, 1
        // Predicated region
        $region13: #{tpu_custom_call.1} parent=11 // pred_check
          %p147 = pneg %p64
        $region14: #{tpu_custom_call.1} parent=11 // pred_check_branch
          %149 = sbr.rel (%p147) target = $region16
        $region15: #{tpu_custom_call.1} parent=11 // pred_region
          %s151 = ssub.s32 256, 256
          %152 = vsyncadd [#allocation7], %s151
          %s153 = sshll.u32 [#allocation6], 4
          %s154 = int_to_ptr.vmem [resolvable:$true] %s153
          %159 = dma.hbm_to_vmem [thread:$0]  %s1, 256, %s154, [#allocation7], 128, 128, 8
        $region16: #{tpu_custom_call.1} parent=11 // pred_fallthru
          _
        // Predicated region
        $region17: #{tpu_custom_call.1} parent=11 // pred_check
          %p160 = pneg %p85
        $region18: #{tpu_custom_call.1} parent=11 // pred_check_branch
          %162 = sbr.rel (%p160) target = $region20
        $region19: #{tpu_custom_call.1} parent=11 // pred_region
          %s164 = ssub.s32 512, 512
          %165 = vsyncadd [#allocation7], %s164
          %s166 = sshll.u32 [#allocation8], 4
          %s167 = int_to_ptr.vmem [resolvable:$true] %s166
          %172 = dma.hbm_to_vmem [thread:$0]  %s2, 512, %s167, [#allocation7], 128, 128, 8
        $region20: #{tpu_custom_call.1} parent=11 // pred_fallthru
          _
        // Predicated region
        $region21: #{tpu_custom_call.1} parent=11 // pred_check
          %p173 = pneg %p106
        $region22: #{tpu_custom_call.1} parent=11 // pred_check_branch
          %175 = sbr.rel (%p173) target = $region24
        $region23: #{tpu_custom_call.1} parent=11 // pred_region
          _
        $region24: #{tpu_custom_call.1} parent=11 // pred_fallthru
          _
      $region12: #{tpu_custom_call.1} parent=5 // pred_fallthru
        _
      %p176 = scmp.lt.s32.totalorder %s17, 2
      // Predicated region
      $region25: #{tpu_custom_call.1} parent=5 // pred_check
        %p177 = pneg %p176
      $region26: #{tpu_custom_call.1} parent=5 // pred_check_branch
        %179 = sbr.rel (%p177) target = $region28
      $region27: #{tpu_custom_call.1} parent=5 // pred_region
        // Predicated region
        $region29: #{tpu_custom_call.1} parent=27 // pred_check
          %p180 = pneg %p37
        $region30: #{tpu_custom_call.1} parent=27 // pred_check_branch
          %182 = sbr.rel (%p180) target = $region32
        $region31: #{tpu_custom_call.1} parent=27 // pred_region
          %s183 = sand.u32 %s27, 1
          %s184 = scalar_lea.sflag [#allocation4], %s183
          %s185 = sand.u32 %s27, 1
          %s186 = smul.addr %s185, 2
          %s187 = scalar_lea.vmem [#allocation3], %s186
          %s189 = ssub.s32 32, 32
          %190 = vsyncadd %s184, %s189
          %s191 = smul.addr %s17, 32
          %s192 = scalar_lea.hbm %s0, %s191
          %s194 = sshll.u32 %s187, 4
          %s195 = int_to_ptr.vmem [resolvable:$true] %s194
          %197 = dma.hbm_to_vmem [thread:$0]  %s192, 32, %s195, %s184
        $region32: #{tpu_custom_call.1} parent=27 // pred_fallthru
          _
      $region28: #{tpu_custom_call.1} parent=5 // pred_fallthru
        _
      %p198 = scmp.le.s32.totalorder 1, %s17
      %p199 = scmp.lt.s32.totalorder %s17, 3
      %p200 = pnand %p198, %p199
      %p201 = pneg %p200
      // Predicated region
      $region33: #{tpu_custom_call.1} parent=5 // pred_check
        _
      $region34: #{tpu_custom_call.1} parent=5 // pred_check_branch
        %203 = sbr.rel (%p200) target = $region36
      $region35: #{tpu_custom_call.1} parent=5 // pred_region
        %s204 = ssub.s32 %s17, 1
        %s205 = sand.u32 %s30, 1
        %s206 = scalar_lea.sflag [#allocation4], %s205
        %s207 = sand.u32 %s30, 1
        %s208 = smul.addr %s207, 2
        %s209 = scalar_lea.vmem [#allocation3], %s208
        // Predicated region
        $region37: #{tpu_custom_call.1} parent=35 // pred_check
          %p210 = pneg %p43
        $region38: #{tpu_custom_call.1} parent=35 // pred_check_branch
          %212 = sbr.rel (%p210) target = $region40
        $region39: #{tpu_custom_call.1} parent=35 // pred_region
          %213 = dma.done %s206, 32
        $region40: #{tpu_custom_call.1} parent=35 // pred_fallthru
          _
        // Predicated region
        $region41: #{tpu_custom_call.1} parent=35 // pred_check
          %p214 = pneg %p64
        $region42: #{tpu_custom_call.1} parent=35 // pred_check_branch
          %216 = sbr.rel (%p214) target = $region44
        $region43: #{tpu_custom_call.1} parent=35 // pred_region
          %217 = dma.done [#allocation7], 256
        $region44: #{tpu_custom_call.1} parent=35 // pred_fallthru
          _
        // Predicated region
        $region45: #{tpu_custom_call.1} parent=35 // pred_check
          %p218 = pneg %p85
        $region46: #{tpu_custom_call.1} parent=35 // pred_check_branch
          %220 = sbr.rel (%p218) target = $region48
        $region47: #{tpu_custom_call.1} parent=35 // pred_region
          %221 = dma.done [#allocation7], 512
        $region48: #{tpu_custom_call.1} parent=35 // pred_fallthru
          _
        %s222 = sand.u32 %s30, 1
        %s223 = scalar_lea.sflag [#allocation4], %s222
        %s224 = sand.u32 %s30, 1
        %s225 = smul.addr %s224, 2
        %s226 = scalar_lea.vmem [#allocation3], %s225
        %p227 = pneg %p43
        %p228 = pneg %p40
        %p229 = pneg %p64
        %p230 = pneg %p61
        %p231 = pneg %p85
        %p232 = pneg %p82
        %p233 = pneg %p106
        %p234 = pneg %p103
        %p235 = pneg %p132
        %p236 = pneg %p129
        %s237 = sand.u32 %s119, 1
        %s238 = scalar_lea.sflag [#allocation5], %s237
        %s239 = sand.u32 %s119, 1
        %s240 = smul.addr %s239, 2
        %s241 = scalar_lea.vmem [#allocation9], %s240
        %v242 = vld [vmem:[%s209] sm:$0x3]
        %243 = vst [vmem:[#allocation2] sm:$0xff] 0.0
        %vm244 = vcmask 392192
        %245 = vst.msk [vmem:[#allocation2 + $0x8] sm:$0xff] %vm244, 0.0
        %246 = vst [vmem:[#allocation2 + $0x10] sm:$0x7] 0.0
        %vm247 = vcmask 387072
        %248 = vst.msk [vmem:[#allocation2 + $0x18] sm:$0x7] %vm247, 0.0
        %vm249 = vcmask 254976
        %250 = vst.msk [vmem:[#allocation2 + $0x18] sm:$0x3] %vm249, %v242
        %v251 = vld [vmem:[#allocation2] sm:$0xff]
        %v252 = vld [vmem:[#allocation2 + $0x8] sm:$0xff]
        %v253 = vld [vmem:[#allocation2 + $0x10] sm:$0x7]
        %v254 = vld [vmem:[#allocation2 + $0x18] sm:$0x7]
        %v255 = vld [vmem:[#allocation6] sm:$0xff]
        %v256 = vld [vmem:[#allocation6 + $0x8] sm:$0x1]
        %v257 = vlaneseq
        %v258 = vshrl.u32 %v257, 7
        %v259 = vsub.s32 0, %v258
        %v260 = vrot.slane %v255, %v259
        %262 = vrot.lane.b32.xlu0 %v260, 112
        %v263 = vpop.permute.xlu0 %262
        %v265 = vmul.f32 %v251, %v263
        %v266 = vmul.f32 %v252, %v263
        %v267 = vmul.f32 %v253, %v263
        %v268 = vmul.f32 %v254, %v263
        %v269 = vadd.f32 %v265, 0.0
        %v270 = vadd.f32 %v266, 0.0
        %v271 = vadd.f32 %v267, 0.0
        %v272 = vadd.f32 %v268, 0.0
        %v273 = vlaneseq
        %v274 = vshrl.u32 %v273, 7
        %v275 = vsub.s32 1, %v274
        %v276 = vrot.slane %v255, %v275
        %v277 = vmul.f32 %v252, %v276
        %v278 = vmul.f32 %v254, %v276
        %281 = vrot.lane.b32.xlu0 %v277, 112
        %v282 = vpop.permute.xlu0 %281
        %283 = vrot.lane.b32.xlu0 %v278, 112
        %v284 = vpop.permute.xlu0 %283
        %v287 = vadd.f32 %v269, %v282
        %v288 = vadd.f32 %v270, %v282
        %v289 = vadd.f32 %v271, %v284
        %v290 = vadd.f32 %v272, %v284
        %v291 = vlaneseq
        %v292 = vshrl.u32 %v291, 7
        %v293 = vsub.s32 2, %v292
        %v294 = vrot.slane %v255, %v293
        %296 = vrot.lane.b32.xlu0 %v294, 16
        %v297 = vpop.permute.xlu0 %296
        %v299 = vmul.f32 %v252, %v297
        %v300 = vmul.f32 %v254, %v297
        %303 = vrot.lane.b32.xlu0 %v299, 96
        %v304 = vpop.permute.xlu0 %303
        %305 = vrot.lane.b32.xlu0 %v300, 96
        %v306 = vpop.permute.xlu0 %305
        %v309 = vadd.f32 %v287, %v304
        %v310 = vadd.f32 %v288, %v304
        %v311 = vadd.f32 %v289, %v306
        %v312 = vadd.f32 %v290, %v306
        %v313 = vlaneseq
        %v314 = vshrl.u32 %v313, 7
        %v315 = vsub.s32 3, %v314
        %v316 = vrot.slane %v255, %v315
        %318 = vrot.lane.b32.xlu0 %v316, 112
        %v319 = vpop.permute.xlu0 %318
        %v321 = vmul.f32 %v253, %v319
        %v322 = vmul.f32 %v254, %v319
        %v325 = vrot.slane %v321, 1
        %v326 = vrot.slane %v322, 1
        %v329 = vadd.f32 %v309, %v325
        %v330 = vadd.f32 %v310, %v326
        %v331 = vadd.f32 %v311, %v325
        %v332 = vadd.f32 %v312, %v326
        %v333 = vlaneseq
        %v334 = vshrl.u32 %v333, 7
        %v335 = vsub.s32 4, %v334
        %v336 = vrot.slane %v255, %v335
        %v337 = vmul.f32 %v254, %v336
        %v339 = vrot.slane %v337, 1
        %340 = vrot.lane.b32.xlu0 %v339, 112
        %v341 = vpop.permute.xlu0 %340
        %v343 = vadd.f32 %v329, %v341
        %v344 = vadd.f32 %v330, %v341
        %v345 = vadd.f32 %v331, %v341
        %v346 = vadd.f32 %v332, %v341
        %v347 = vlaneseq
        %v348 = vshrl.u32 %v347, 7
        %v349 = vsub.s32 5, %v348
        %v350 = vrot.slane %v255, %v349
        %352 = vrot.lane.b32.xlu0 %v350, 16
        %v353 = vpop.permute.xlu0 %352
        %v355 = vmul.f32 %v254, %v353
        %v357 = vrot.slane %v355, 1
        %358 = vrot.lane.b32.xlu0 %v357, 96
        %v359 = vpop.permute.xlu0 %358
        %v361 = vadd.f32 %v343, %v359
        %v362 = vadd.f32 %v344, %v359
        %v363 = vadd.f32 %v345, %v359
        %v364 = vadd.f32 %v346, %v359
        %v365 = vlaneseq
        %v366 = vshrl.u32 %v365, 7
        %v367 = vsub.s32 6, %v366
        %v368 = vrot.slane %v255, %v367
        %370 = vrot.lane.b32.xlu0 %v368, 112
        %v371 = vpop.permute.xlu0 %370
        %v373 = vmul.f32 %v253, %v371
        %v374 = vmul.f32 %v254, %v371
        %v377 = vrot.slane %v373, 2
        %v378 = vrot.slane %v374, 2
        %v381 = vadd.f32 %v361, %v377
        %v382 = vadd.f32 %v362, %v378
        %v383 = vadd.f32 %v363, %v377
        %v384 = vadd.f32 %v364, %v378
        %v385 = vlaneseq
        %v386 = vshrl.u32 %v385, 7
        %v387 = vsub.s32 7, %v386
        %v388 = vrot.slane %v255, %v387
        %v389 = vmul.f32 %v254, %v388
        %v391 = vrot.slane %v389, 2
        %392 = vrot.lane.b32.xlu0 %v391, 112
        %v393 = vpop.permute.xlu0 %392
        %v395 = vadd.f32 %v381, %v393
        %v396 = vadd.f32 %v382, %v393
        %v397 = vadd.f32 %v383, %v393
        %v398 = vadd.f32 %v384, %v393
        %v399 = vlaneseq
        %v400 = vshrl.u32 %v399, 7
        %v401 = vsub.s32 0, %v400
        %v402 = vrot.slane %v256, %v401
        %404 = vrot.lane.b32.xlu0 %v402, 16
        %v405 = vpop.permute.xlu0 %404
        %v407 = vmul.f32 %v254, %v405
        %v409 = vrot.slane %v407, 2
        %410 = vrot.lane.b32.xlu0 %v409, 96
        %v411 = vpop.permute.xlu0 %410
        %v413 = vadd.f32 %v395, %v411
        %v414 = vadd.f32 %v396, %v411
        %v415 = vadd.f32 %v397, %v411
        %v416 = vadd.f32 %v398, %v411
        %v417 = vld [vmem:[#allocation8] sm:$0xff]
        %v418 = vld [vmem:[#allocation8 + $0x8] sm:$0xff]
        %v419 = vld [vmem:[#allocation8 + $0x10] sm:$0xff]
        %v420 = vld [vmem:[#allocation8 + $0x18] sm:$0xff]
        %v421 = vld [vmem:[%s3] sm:$0x1]
        %v423 = vlaneseq
        %v424 = vshrl.u32 %v423, 7
        %v425 = vsub.s32 0, %v424
        %v426 = vrot.slane %v421, %v425
        %vm432 = vcmask 1040384
        %v433 = vrot.slane %v413, 7
        %v434 = vrot.slane %v415, 7
        %v435 = vsel %vm432, %v433, %v434
        %v436 = vrot.slane %v414, 7
        %v437 = vrot.slane %v416, 7
        %v438 = vsel %vm432, %v436, %v437
        %439 = vrot.lane.b32.xlu0 %v435, 16
        %v440 = vpop.permute.xlu0 %439
        %441 = vrot.lane.b32.xlu0 %v438, 16
        %v442 = vpop.permute.xlu0 %441
        %vm443 = vcmask 130048
        %v444 = vsel %vm443, %v440, %v442
        %vm445 = vcmask 261120
        %v446 = vsel %vm445, %v444, 0
        %448 = vmatprep.subr.mxu0 0.0
        %449 = vmatpush1.msra.mxu0 %v417
        %450 = vmatprep.subr.mxu0 0.0
        %451 = vmatpush1.msra.mxu0 %v418
        %452 = vmatprep.subr.mxu0 0.0
        %453 = vmatpush1.msra.mxu0 %v419
        %454 = vmatprep.subr.mxu0 0.0
        %455 = vmatpush1.msra.mxu0 %v420
        %456 = vmatprep.subr.mxu0 0.0
        %457 = vmatpush1.msra.mxu0 0.0
        %458 = vmatprep.subr.mxu0 0.0
        %459 = vmatpush1.msra.mxu0 0.0
        %460 = vmatprep.subr.mxu0 0.0
        %461 = vmatpush1.msra.mxu0 0.0
        %462 = vmatprep.subr.mxu0 0.0
        %463 = vmatpush1.msra.mxu0 0.0
        %464 = vmatprep.subr.mxu0 0.0
        %465 = vmatpush1.msra.mxu0 0.0
        %466 = vmatprep.subr.mxu0 0.0
        %467 = vmatpush1.msra.mxu0 0.0
        %468 = vmatprep.subr.mxu0 0.0
        %469 = vmatpush1.msra.mxu0 0.0
        %470 = vmatprep.subr.mxu0 0.0
        %471 = vmatpush1.msra.mxu0 0.0
        %472 = vmatprep.subr.mxu0 0.0
        %473 = vmatpush1.msra.mxu0 0.0
        %474 = vmatprep.subr.mxu0 0.0
        %475 = vmatpush1.msra.mxu0 0.0
        %476 = vmatprep.subr.mxu0 0.0
        %477 = vmatpush1.msra.mxu0 0.0
        %478 = vmatprep.subr.mxu0 0.0
        %479 = vmatpush1.msra.mxu0 0.0
        %480 = vmatprep.subr.mxu0 0.0
        %481 = vmatpush1.msra.mxu0 0.0
        %482 = vmatprep.subr.mxu0 0.0
        %483 = vmatpush1.msra.mxu0 0.0
        %484 = vmatprep.subr.mxu0 0.0
        %485 = vmatpush1.msra.mxu0 0.0
        %486 = vmatprep.subr.mxu0 0.0
        %487 = vmatpush1.msra.mxu0 0.0
        %488 = vmatprep.subr.mxu0 0.0
        %489 = vmatpush1.msra.mxu0 0.0
        %490 = vmatprep.subr.mxu0 0.0
        %491 = vmatpush1.msra.mxu0 0.0
        %492 = vmatprep.subr.mxu0 0.0
        %493 = vmatpush1.msra.mxu0 0.0
        %494 = vmatprep.subr.mxu0 0.0
        %495 = vmatpush1.msra.mxu0 0.0
        %496 = vmatprep.subr.mxu0 0.0
        %497 = vmatpush1.msra.mxu0 0.0
        %498 = vmatprep.subr.mxu0 0.0
        %499 = vmatpush1.msra.mxu0 0.0
        %500 = vmatprep.subr.mxu0 0.0
        %501 = vmatpush1.msra.mxu0 0.0
        %502 = vmatprep.subr.mxu0 0.0
        %503 = vmatpush1.msra.mxu0 0.0
        %504 = vmatprep.subr.mxu0 0.0
        %505 = vmatpush1.msra.mxu0 0.0
        %506 = vmatprep.subr.mxu0 0.0
        %507 = vmatpush1.msra.mxu0 0.0
        %508 = vmatprep.subr.mxu0 0.0
        %509 = vmatpush1.msra.mxu0 0.0
        %510 = vmatprep.subr.mxu0 0.0
        %511 = vmatpush1.msra.mxu0 0.0
        %512 = vmatprep.mubr.f32.mxu0 0.0
        %513 = vmatmul.mubr.f32.gmra.mrb[0].mxu0 %v446
        %v514 = vpop.f32.mrb[0].mxu0
        %v515 = vadd.f32 %v426, %v514
        %v516 = vpop.f32.mrb[0].mxu0
        %517 = vdwg.mxu0
        %v518 = vmax.f32 %v515, 0.0
        %519 = vst.msk [vmem:[%s241] sm:$0x3] %vm249, %v518
        %s520 = sand.u32 %s119, 1
        %s521 = scalar_lea.sflag [#allocation5], %s520
        %s522 = sand.u32 %s119, 1
        %s523 = smul.addr %s522, 2
        %s524 = scalar_lea.vmem [#allocation9], %s523
        // Predicated region
        $region49: #{tpu_custom_call.1} parent=35 // pred_check
          %p525 = pneg %p129
        $region50: #{tpu_custom_call.1} parent=35 // pred_check_branch
          %527 = sbr.rel (%p525) target = $region52
        $region51: #{tpu_custom_call.1} parent=35 // pred_region
          %s529 = ssub.s32 32, 32
          %530 = vsyncadd %s521, %s529
          %s531 = smul.addr %s22, 32
          %s532 = scalar_lea.hbm %s4, %s531
          %s534 = sshll.u32 %s524, 4
          %s535 = int_to_ptr.vmem [resolvable:$true] %s534
          %537 = dma.vmem_to_hbm [thread:$0]  %s535, 32, %s532, %s521
        $region52: #{tpu_custom_call.1} parent=35 // pred_fallthru
          _
      $region36: #{tpu_custom_call.1} parent=5 // pred_fallthru
        _
      %p538 = scmp.le.s32.totalorder 2, %s17
      // Predicated region
      $region53: #{tpu_custom_call.1} parent=5 // pred_check
        %p539 = pneg %p538
      $region54: #{tpu_custom_call.1} parent=5 // pred_check_branch
        %541 = sbr.rel (%p539) target = $region56
      $region55: #{tpu_custom_call.1} parent=5 // pred_region
        %s542 = ssub.s32 %s17, 2
        // Predicated region
        $region57: #{tpu_custom_call.1} parent=55 // pred_check
          %p543 = pneg %p135
        $region58: #{tpu_custom_call.1} parent=55 // pred_check_branch
          %545 = sbr.rel (%p543) target = $region60
        $region59: #{tpu_custom_call.1} parent=55 // pred_region
          %s546 = sand.u32 %s120, 1
          %s547 = scalar_lea.sflag [#allocation5], %s546
          %s548 = sand.u32 %s120, 1
          %s549 = smul.addr %s548, 2
          %s550 = scalar_lea.vmem [#allocation9], %s549
          %551 = dma.done %s547, 32
        $region60: #{tpu_custom_call.1} parent=55 // pred_fallthru
          _
      $region56: #{tpu_custom_call.1} parent=5 // pred_fallthru
        _
    $region6: #{tpu_custom_call.1} parent=1 // loop_footer
      %s21 = sadd.s32 1, %s17
    $region7: #{tpu_custom_call.1} parent=1 // loop_footer_branch
      %16 = sbr.rel target = $region3
    $region8: #{tpu_custom_call.1} parent=1 // loop_exit
      _
    %552 = vsyncpa [#allocation4], 1
    %s553 = scalar_lea.sflag [#allocation4], 1
    %554 = vsyncpa %s553, 1
    %555 = vsyncpa [#allocation7], 1
    %556 = vsyncpa [#allocation5], 1
    %s557 = scalar_lea.sflag [#allocation5], 1
    %558 = vsyncpa %s557, 1

</llo_original>
